<compile_context>
chip_gen: v7x
topology: tpu7x:2x2x1
jax: 0.10.0
libtpu: 0.0.40
codegen_flags: <defaults>
</compile_context>

<pallas_src>
import jax
import jax.numpy as jnp
from jax.experimental import pallas as pl
from jax.experimental.pallas import tpu as pltpu


def _make_classifier_kernel(bf16_elementwise):
    """Builds the per-tile kernel; bf16 elementwise only on bf16-native VPU/EUP."""
    act_dtype = jnp.bfloat16 if bf16_elementwise else jnp.float32

    def kernel(x_ref, w1_ref, b1_ref, w2_ref, b2_ref, w3_ref, b3_ref, o_ref):
        x = x_ref[...]                                              # (16, TB) f32

        # Layer 1: K=16 is MXU-pad dominated regardless of dtype -> f32 inputs.
        a1 = jnp.dot(w1_ref[...], x, preferred_element_type=jnp.float32)
        h1 = jnp.tanh((a1 + b1_ref[...]).astype(act_dtype))        # (128, TB)

        # Layer 2: carries >80% of the FLOPs -> bf16 MXU inputs, f32 acc.
        a2 = jnp.dot(w2_ref[...], h1.astype(jnp.bfloat16),
                     preferred_element_type=jnp.float32)
        h2 = jnp.tanh((a2 + b2_ref[...]).astype(act_dtype))        # (256, TB)

        # Layer 3: bf16 MXU inputs, f32 logits.
        logits = jnp.dot(w3_ref[...], h2.astype(jnp.bfloat16),
                         preferred_element_type=jnp.float32) + b3_ref[...]  # (16, TB)

        # Softmax over the feature axis (16 sublane rows); batch stays on the
        # lanes so the store below is a dense, unmasked vst.  Exact reciprocal:
        # the tail is tiny now, and rows sum to 1 at f32 precision.
        m = jnp.max(logits, axis=0, keepdims=True)                  # (1, TB)
        e = jnp.exp(logits - m)
        denom = jnp.sum(e, axis=0, keepdims=True)
        o_ref[...] = e * pl.reciprocal(denom, approx=False)

    return kernel


def _bf16_elementwise_default():
    """bf16 tanh/exp only where the VPU/EUP are bf16-native (v6e / v7x)."""
    try:
        kind = jax.devices()[0].device_kind.lower()
    except Exception:
        return True
    return not any(tag in kind for tag in ("v2", "v3", "v4", "v5"))


def _choose_batch_tile(B, max_tile=2048):
    """Adaptive lane-tile: whole batch for small B, else lane-multiple tiles
    with an even grid length (v7x megacore balance)."""
    if B <= 512:
        return B                                   # block == full dim (legal)
    n_tiles = max(2, -(-B // max_tile))            # at least 2 grid steps
    if n_tiles % 2:
        n_tiles += 1                               # even grid for 2 TCs
    tb = -(-B // n_tiles)
    tb = -(-tb // 128) * 128                       # round up to a lane multiple
    return min(tb, max_tile)


def classifier_forward(x, params, *, max_batch_tile=2048, bf16_elementwise=None,
                       xla_fallback_batch=0):
    """Forward pass of the Classifier.  params are torch-oriented: w (out, in), b (out,)."""
    w1, b1, w2, b2, w3, b3 = params
    B, d_in = x.shape
    d_out = w3.shape[0]

    # Tiny batches: fixed pallas_call/DMA latency dominates; callers can opt in
    # to a plain-XLA path.  Kept at 0 here so the test exercises the kernel.
    if B <= xla_fallback_batch:
        return reference_forward(x, params)

    if bf16_elementwise is None:
        bf16_elementwise = _bf16_elementwise_default()

    # Lane-dense layout: features on sublanes, batch on lanes.
    x_t = x.T                                      # (16, B)
    w2_k = w2.astype(jnp.bfloat16)                 # MXU input dtype (acc stays f32)
    w3_k = w3.astype(jnp.bfloat16)
    b1_k, b2_k, b3_k = b1[:, None], b2[:, None], b3[:, None]   # (out, 1) columns

    TB = _choose_batch_tile(B, max_batch_tile)
    grid = (pl.cdiv(B, TB),)

    def resident(arr):
        # Whole array as one block, same block every grid step -> stays VMEM-resident.
        return pl.BlockSpec(arr.shape, lambda i: (0, 0))
    # TODO(synk): pipeline_mode=pl.Buffered(1) on the resident specs would drop
    # their unused second buffer (~150 KiB); skipped since VMEM is <5% utilized.

    y_t = pl.pallas_call(
        _make_classifier_kernel(bf16_elementwise),
        out_shape=jax.ShapeDtypeStruct((d_out, B), jnp.float32),
        grid=grid,
        in_specs=[
            pl.BlockSpec((d_in, TB), lambda i: (0, i)),
            resident(w1), resident(b1_k),
            resident(w2_k), resident(b2_k),
            resident(w3_k), resident(b3_k),
        ],
        out_specs=pl.BlockSpec((d_out, TB), lambda i: (0, i)),
        compiler_params=pltpu.CompilerParams(
            dimension_semantics=("parallel",),
        ),
    )(x_t, w1, b1_k, w2_k, b2_k, w3_k, b3_k)

    return y_t.T                                   # (B, 16)


def init_params(key):
    """Deterministic init mimicking torch.nn.Linear: w (out, in), b (out,), +/-1/sqrt(fan_in)."""
    def linear(key, fan_in, fan_out):
        kw, kb = jax.random.split(key)
        bound = 1.0 / jnp.sqrt(fan_in)
        w = jax.random.uniform(kw, (fan_out, fan_in), jnp.float32, -bound, bound)
        b = jax.random.uniform(kb, (fan_out,), jnp.float32, -bound, bound)
        return w, b

    k1, k2, k3 = jax.random.split(key, 3)
    w1, b1 = linear(k1, 16, 128)
    w2, b2 = linear(k2, 128, 256)
    w3, b3 = linear(k3, 256, 16)
    return (w1, b1, w2, b2, w3, b3)


def reference_forward(x, params):
    w1, b1, w2, b2, w3, b3 = params
    h1 = jnp.tanh(x @ w1.T + b1)
    h2 = jnp.tanh(h1 @ w2.T + b2)
    logits = h2 @ w3.T + b3
    return jax.nn.softmax(logits, axis=1)


if __name__ == "__main__":
    key = jax.random.PRNGKey(0)
    k_params, k_x, k_x2 = jax.random.split(key, 3)

    params = init_params(k_params)

    # Small shape consistent with the module (B=8 rows of 16 features).
    x = jax.random.normal(k_x, (8, 16), dtype=jnp.float32)
    y = jax.block_until_ready(classifier_forward(x, params))
    y_ref = reference_forward(x, params)
    assert y.shape == (8, 16)
    # bf16 MXU inputs (+ bf16 tanh on v6e/v7x) -> loosened tolerance, fine for
    # classifier probabilities.
    assert jnp.allclose(y, y_ref, atol=1e-2, rtol=5e-2)
    # Exact reciprocal in the softmax -> rows sum to 1 at f32 precision.
    assert jnp.allclose(jnp.sum(y, axis=1), jnp.ones((8,)), atol=1e-3)

    # Exercise the tiled / multi-step (even) grid path as well: 2 tiles of 512.
    x_big = jax.random.normal(k_x2, (1024, 16), dtype=jnp.float32)
    y_big = jax.block_until_ready(classifier_forward(x_big, params))
    y_big_ref = reference_forward(x_big, params)
    assert y_big.shape == (1024, 16)
    assert jnp.allclose(y_big, y_big_ref, atol=1e-2, rtol=5e-2)

    print("KERNEL_OK")
</pallas_src>

<mosaic_0001>
module attributes {stable_mosaic.version = 11 : i64} {
  func.func @kernel(%arg0: i32, %arg1: memref<16x8xf32, #tpu.memory_space<vmem>>, %arg2: memref<128x16xf32, #tpu.memory_space<vmem>>, %arg3: memref<128x1xf32, #tpu.memory_space<vmem>>, %arg4: memref<256x128xbf16, #tpu.memory_space<vmem>>, %arg5: memref<256x1xf32, #tpu.memory_space<vmem>>, %arg6: memref<16x256xbf16, #tpu.memory_space<vmem>>, %arg7: memref<16x1xf32, #tpu.memory_space<vmem>>, %arg8: memref<16x8xf32, #tpu.memory_space<vmem>>) attributes {dimension_semantics = [#tpu.dimension_semantics<parallel>], iteration_bounds = array<i64: 1>, scalar_prefetch = 0 : i64, scratch_operands = 0 : i64, tpu.core_type = #tpu.core_type<tc>, window_params = [{transform_indices = @transform_0, window_bounds = array<i64: 16, 8>}, {pipeline_mode = #tpu.pipeline_mode<synchronous>, transform_indices = @transform_1, window_bounds = array<i64: 128, 16>}, {pipeline_mode = #tpu.pipeline_mode<synchronous>, transform_indices = @transform_2, window_bounds = array<i64: 128, 1>}, {pipeline_mode = #tpu.pipeline_mode<synchronous>, transform_indices = @transform_3, window_bounds = array<i64: 256, 128>}, {pipeline_mode = #tpu.pipeline_mode<synchronous>, transform_indices = @transform_4, window_bounds = array<i64: 256, 1>}, {pipeline_mode = #tpu.pipeline_mode<synchronous>, transform_indices = @transform_5, window_bounds = array<i64: 16, 256>}, {pipeline_mode = #tpu.pipeline_mode<synchronous>, transform_indices = @transform_6, window_bounds = array<i64: 16, 1>}, {transform_indices = @transform_7, window_bounds = array<i64: 16, 8>}]} {
    %c0 = arith.constant 0 : index
    %c0_0 = arith.constant 0 : index
    %0 = vector.load %arg1[%c0, %c0_0] : memref<16x8xf32, #tpu.memory_space<vmem>>, vector<16x8xf32>
    %c0_1 = arith.constant 0 : index
    %c0_2 = arith.constant 0 : index
    %1 = vector.load %arg2[%c0_1, %c0_2] : memref<128x16xf32, #tpu.memory_space<vmem>>, vector<128x16xf32>
    %cst = arith.constant dense<0.000000e+00> : vector<128x8xf32>
    %2 = tpu.matmul %1, %0, %cst {dimension_numbers = #tpu.dot_dimension_numbers<[1], [0], [0], [1], [0, 0, 1, 1], [], []>} : vector<128x16xf32>, vector<16x8xf32>, vector<128x8xf32> -> vector<128x8xf32>
    %c0_3 = arith.constant 0 : index
    %c0_4 = arith.constant 0 : index
    %3 = vector.load %arg3[%c0_3, %c0_4] : memref<128x1xf32, #tpu.memory_space<vmem>>, vector<128x1xf32>
    %4 = vector.broadcast %3 : vector<128x1xf32> to vector<128x8xf32>
    %5 = arith.addf %2, %4 : vector<128x8xf32>
    %6 = arith.truncf %5 : vector<128x8xf32> to vector<128x8xbf16>
    %7 = math.tanh %6 : vector<128x8xbf16>
    %c0_5 = arith.constant 0 : index
    %c0_6 = arith.constant 0 : index
    %8 = vector.load %arg4[%c0_5, %c0_6] : memref<256x128xbf16, #tpu.memory_space<vmem>>, vector<256x128xbf16>
    %cst_7 = arith.constant dense<0.000000e+00> : vector<256x8xf32>
    %9 = tpu.matmul %8, %7, %cst_7 {dimension_numbers = #tpu.dot_dimension_numbers<[1], [0], [0], [1], [0, 0, 1, 1], [], []>} : vector<256x128xbf16>, vector<128x8xbf16>, vector<256x8xf32> -> vector<256x8xf32>
    %c0_8 = arith.constant 0 : index
    %c0_9 = arith.constant 0 : index
    %10 = vector.load %arg5[%c0_8, %c0_9] : memref<256x1xf32, #tpu.memory_space<vmem>>, vector<256x1xf32>
    %11 = vector.broadcast %10 : vector<256x1xf32> to vector<256x8xf32>
    %12 = arith.addf %9, %11 : vector<256x8xf32>
    %13 = arith.truncf %12 : vector<256x8xf32> to vector<256x8xbf16>
    %14 = math.tanh %13 : vector<256x8xbf16>
    %c0_10 = arith.constant 0 : index
    %c0_11 = arith.constant 0 : index
    %15 = vector.load %arg6[%c0_10, %c0_11] : memref<16x256xbf16, #tpu.memory_space<vmem>>, vector<16x256xbf16>
    %cst_12 = arith.constant dense<0.000000e+00> : vector<16x8xf32>
    %16 = tpu.matmul %15, %14, %cst_12 {dimension_numbers = #tpu.dot_dimension_numbers<[1], [0], [0], [1], [0, 0, 1, 1], [], []>} : vector<16x256xbf16>, vector<256x8xbf16>, vector<16x8xf32> -> vector<16x8xf32>
    %c0_13 = arith.constant 0 : index
    %c0_14 = arith.constant 0 : index
    %17 = vector.load %arg7[%c0_13, %c0_14] : memref<16x1xf32, #tpu.memory_space<vmem>>, vector<16x1xf32>
    %18 = vector.broadcast %17 : vector<16x1xf32> to vector<16x8xf32>
    %19 = arith.addf %16, %18 : vector<16x8xf32>
    %cst_15 = arith.constant dense<0xFF800000> : vector<8xf32>
    %20 = vector.multi_reduction <maximumf>, %19, %cst_15 [0] : vector<16x8xf32> to vector<8xf32>
    %21 = vector.shape_cast %20 : vector<8xf32> to vector<1x8xf32>
    %22 = vector.broadcast %21 : vector<1x8xf32> to vector<16x8xf32>
    %23 = arith.subf %19, %22 : vector<16x8xf32>
    %24 = math.exp %23 : vector<16x8xf32>
    %cst_16 = arith.constant dense<0.000000e+00> : vector<8xf32>
    %25 = vector.multi_reduction <add>, %24, %cst_16 [0] : vector<16x8xf32> to vector<8xf32>
    %26 = vector.shape_cast %25 : vector<8xf32> to vector<1x8xf32>
    %27 = tpu.reciprocal %26 : vector<1x8xf32> -> vector<1x8xf32>
    %28 = vector.broadcast %27 : vector<1x8xf32> to vector<16x8xf32>
    %29 = arith.mulf %24, %28 : vector<16x8xf32>
    %c0_17 = arith.constant 0 : index
    %c0_18 = arith.constant 0 : index
    %30 = vector.load %arg8[%c0_17, %c0_18] : memref<16x8xf32, #tpu.memory_space<vmem>>, vector<16x8xf32>
    tpu.vector_store %arg8[%c0_17, %c0_18], %29 {strides = array<i32>} : memref<16x8xf32, #tpu.memory_space<vmem>>, vector<16x8xf32>,
    return
  }
  func.func @transform_0(%arg0: i32) -> (i32, i32) {
    %c0_i32 = arith.constant 0 : i32
    %c0_i32_0 = arith.constant 0 : i32
    return %c0_i32, %arg0 : i32, i32
  }
  func.func @transform_1(%arg0: i32) -> (i32, i32) {
    %c0_i32 = arith.constant 0 : i32
    %c0_i32_0 = arith.constant 0 : i32
    %c0_i32_1 = arith.constant 0 : i32
    return %c0_i32, %c0_i32_0 : i32, i32
  }
  func.func @transform_2(%arg0: i32) -> (i32, i32) {
    %c0_i32 = arith.constant 0 : i32
    %c0_i32_0 = arith.constant 0 : i32
    %c0_i32_1 = arith.constant 0 : i32
    return %c0_i32, %c0_i32_0 : i32, i32
  }
  func.func @transform_3(%arg0: i32) -> (i32, i32) {
    %c0_i32 = arith.constant 0 : i32
    %c0_i32_0 = arith.constant 0 : i32
    %c0_i32_1 = arith.constant 0 : i32
    return %c0_i32, %c0_i32_0 : i32, i32
  }
  func.func @transform_4(%arg0: i32) -> (i32, i32) {
    %c0_i32 = arith.constant 0 : i32
    %c0_i32_0 = arith.constant 0 : i32
    %c0_i32_1 = arith.constant 0 : i32
    return %c0_i32, %c0_i32_0 : i32, i32
  }
  func.func @transform_5(%arg0: i32) -> (i32, i32) {
    %c0_i32 = arith.constant 0 : i32
    %c0_i32_0 = arith.constant 0 : i32
    %c0_i32_1 = arith.constant 0 : i32
    return %c0_i32, %c0_i32_0 : i32, i32
  }
  func.func @transform_6(%arg0: i32) -> (i32, i32) {
    %c0_i32 = arith.constant 0 : i32
    %c0_i32_0 = arith.constant 0 : i32
    %c0_i32_1 = arith.constant 0 : i32
    return %c0_i32, %c0_i32_0 : i32, i32
  }
  func.func @transform_7(%arg0: i32) -> (i32, i32) {
    %c0_i32 = arith.constant 0 : i32
    %c0_i32_0 = arith.constant 0 : i32
    return %c0_i32, %arg0 : i32, i32
  }
}

</mosaic_0001>

<llo_original>
// kernel: tpu_custom_call.1
$region0: #{tpu_custom_call.1}
  #allocation0 [shape = 'u32[]', space=smem, size = 0x4, offset = 0x4, fixed_abs, tag = 'smem constant byte address 0x4 - core index']
  #allocation1 [shape = 'u32[144,128]{1,0:T(1,128)}', space=vmem, size = 0x12000, scoped, tag = 'internal scratch']
  %s0 = inlined_call_operand.vmem [shape: f32[16,8], index: 0, kind: input, shape index: {}]
  %s1 = inlined_call_operand.vmem [shape: f32[128,16], index: 1, kind: input, shape index: {}]
  %s2 = inlined_call_operand.vmem [shape: f32[128,1], index: 2, kind: input, shape index: {}]
  %s3 = inlined_call_operand.vmem [shape: bf16[256,128], index: 3, kind: input, shape index: {}]
  %s4 = inlined_call_operand.vmem [shape: f32[256,1], index: 4, kind: input, shape index: {}]
  %s5 = inlined_call_operand.vmem [shape: bf16[16,256], index: 5, kind: input, shape index: {}]
  %s6 = inlined_call_operand.vmem [shape: f32[16,1], index: 6, kind: input, shape index: {}]
  %s7 = inlined_call_operand.vmem [shape: f32[16,8], index: 7, kind: output, shape index: {}]
  %s8 = sld [smem:[#allocation0]]
  $region38: #{tpu_custom_call.1} parent=0
    _
  %s10 = ssub.s32 1, %s8
  %s11 = scalar_select 0, %s10, %s8
  // Predicated region
  $region2: #{tpu_custom_call.1} parent=0 // pred_check
    _
  $region3: #{tpu_custom_call.1} parent=0 // pred_check_branch
    %13 = sbr.rel (0) target = $region5
  $region4: #{tpu_custom_call.1} parent=0 // pred_region
    _
  $region5: #{tpu_custom_call.1} parent=0 // pred_fallthru
    _
  // Predicated region
  $region6: #{tpu_custom_call.1} parent=0 // pred_check
    _
  $region7: #{tpu_custom_call.1} parent=0 // pred_check_branch
    %15 = sbr.rel (0) target = $region9
  $region8: #{tpu_custom_call.1} parent=0 // pred_region
    _
  $region9: #{tpu_custom_call.1} parent=0 // pred_fallthru
    _
  // Predicated region
  $region10: #{tpu_custom_call.1} parent=0 // pred_check
    _
  $region11: #{tpu_custom_call.1} parent=0 // pred_check_branch
    %17 = sbr.rel (0) target = $region13
  $region12: #{tpu_custom_call.1} parent=0 // pred_region
    _
  $region13: #{tpu_custom_call.1} parent=0 // pred_fallthru
    _
  // Predicated region
  $region14: #{tpu_custom_call.1} parent=0 // pred_check
    _
  $region15: #{tpu_custom_call.1} parent=0 // pred_check_branch
    %19 = sbr.rel (0) target = $region17
  $region16: #{tpu_custom_call.1} parent=0 // pred_region
    _
  $region17: #{tpu_custom_call.1} parent=0 // pred_fallthru
    _
  // Predicated region
  $region18: #{tpu_custom_call.1} parent=0 // pred_check
    _
  $region19: #{tpu_custom_call.1} parent=0 // pred_check_branch
    %21 = sbr.rel (0) target = $region21
  $region20: #{tpu_custom_call.1} parent=0 // pred_region
    _
  $region21: #{tpu_custom_call.1} parent=0 // pred_fallthru
    _
  // Predicated region
  $region22: #{tpu_custom_call.1} parent=0 // pred_check
    _
  $region23: #{tpu_custom_call.1} parent=0 // pred_check_branch
    %23 = sbr.rel (0) target = $region25
  $region24: #{tpu_custom_call.1} parent=0 // pred_region
    _
  $region25: #{tpu_custom_call.1} parent=0 // pred_fallthru
    _
  // Predicated region
  $region26: #{tpu_custom_call.1} parent=0 // pred_check
    _
  $region27: #{tpu_custom_call.1} parent=0 // pred_check_branch
    %25 = sbr.rel (0) target = $region29
  $region28: #{tpu_custom_call.1} parent=0 // pred_region
    _
  $region29: #{tpu_custom_call.1} parent=0 // pred_fallthru
    _
  %v27 = vld [vmem:[%s0] sm:$0xff]
  %v28 = vld [vmem:[%s0 + $0x8] sm:$0xff]
  %v29 = vld [vmem:[%s1] sm:$0xff]
  %v30 = vld [vmem:[%s1 + $0x8] sm:$0xff]
  %v31 = vld [vmem:[%s1 + $0x10] sm:$0xff]
  %v32 = vld [vmem:[%s1 + $0x18] sm:$0xff]
  %v33 = vld [vmem:[%s1 + $0x20] sm:$0xff]
  %v34 = vld [vmem:[%s1 + $0x28] sm:$0xff]
  %v35 = vld [vmem:[%s1 + $0x30] sm:$0xff]
  %v36 = vld [vmem:[%s1 + $0x38] sm:$0xff]
  %v37 = vld [vmem:[%s1 + $0x40] sm:$0xff]
  %v38 = vld [vmem:[%s1 + $0x48] sm:$0xff]
  %v39 = vld [vmem:[%s1 + $0x50] sm:$0xff]
  %v40 = vld [vmem:[%s1 + $0x58] sm:$0xff]
  %v41 = vld [vmem:[%s1 + $0x60] sm:$0xff]
  %v42 = vld [vmem:[%s1 + $0x68] sm:$0xff]
  %v43 = vld [vmem:[%s1 + $0x70] sm:$0xff]
  %v44 = vld [vmem:[%s1 + $0x78] sm:$0xff]
  %v45 = vld [vmem:[%s2] sm:$0xff]
  %v46 = vld [vmem:[%s2 + $0x8] sm:$0xff]
  %v47 = vld [vmem:[%s2 + $0x10] sm:$0xff]
  %v48 = vld [vmem:[%s2 + $0x18] sm:$0xff]
  %v49 = vld [vmem:[%s2 + $0x20] sm:$0xff]
  %v50 = vld [vmem:[%s2 + $0x28] sm:$0xff]
  %v51 = vld [vmem:[%s2 + $0x30] sm:$0xff]
  %v52 = vld [vmem:[%s2 + $0x38] sm:$0xff]
  %v53 = vld [vmem:[%s2 + $0x40] sm:$0xff]
  %v54 = vld [vmem:[%s2 + $0x48] sm:$0xff]
  %v55 = vld [vmem:[%s2 + $0x50] sm:$0xff]
  %v56 = vld [vmem:[%s2 + $0x58] sm:$0xff]
  %v57 = vld [vmem:[%s2 + $0x60] sm:$0xff]
  %v58 = vld [vmem:[%s2 + $0x68] sm:$0xff]
  %v59 = vld [vmem:[%s2 + $0x70] sm:$0xff]
  %v60 = vld [vmem:[%s2 + $0x78] sm:$0xff]
  %62 = vset.pattern.permute.xlu0 0
  %63 = vperm.xlu0 %62, %v45
  %v64 = vpop.permute.xlu0 %63
  %67 = vset.pattern.permute.xlu0 0
  %68 = vperm.xlu0 %67, %v46
  %v69 = vpop.permute.xlu0 %68
  %72 = vset.pattern.permute.xlu0 0
  %73 = vperm.xlu0 %72, %v47
  %v74 = vpop.permute.xlu0 %73
  %77 = vset.pattern.permute.xlu0 0
  %78 = vperm.xlu0 %77, %v48
  %v79 = vpop.permute.xlu0 %78
  %82 = vset.pattern.permute.xlu0 0
  %83 = vperm.xlu0 %82, %v49
  %v84 = vpop.permute.xlu0 %83
  %87 = vset.pattern.permute.xlu0 0
  %88 = vperm.xlu0 %87, %v50
  %v89 = vpop.permute.xlu0 %88
  %92 = vset.pattern.permute.xlu0 0
  %93 = vperm.xlu0 %92, %v51
  %v94 = vpop.permute.xlu0 %93
  %97 = vset.pattern.permute.xlu0 0
  %98 = vperm.xlu0 %97, %v52
  %v99 = vpop.permute.xlu0 %98
  %102 = vset.pattern.permute.xlu0 0
  %103 = vperm.xlu0 %102, %v53
  %v104 = vpop.permute.xlu0 %103
  %107 = vset.pattern.permute.xlu0 0
  %108 = vperm.xlu0 %107, %v54
  %v109 = vpop.permute.xlu0 %108
  %112 = vset.pattern.permute.xlu0 0
  %113 = vperm.xlu0 %112, %v55
  %v114 = vpop.permute.xlu0 %113
  %117 = vset.pattern.permute.xlu0 0
  %118 = vperm.xlu0 %117, %v56
  %v119 = vpop.permute.xlu0 %118
  %122 = vset.pattern.permute.xlu0 0
  %123 = vperm.xlu0 %122, %v57
  %v124 = vpop.permute.xlu0 %123
  %127 = vset.pattern.permute.xlu0 0
  %128 = vperm.xlu0 %127, %v58
  %v129 = vpop.permute.xlu0 %128
  %132 = vset.pattern.permute.xlu0 0
  %133 = vperm.xlu0 %132, %v59
  %v134 = vpop.permute.xlu0 %133
  %137 = vset.pattern.permute.xlu0 0
  %138 = vperm.xlu0 %137, %v60
  %v139 = vpop.permute.xlu0 %138
  %vm141 = vcmask 130048
  %v143 = vsel %vm141, %v29, 0
  %v146 = vsel %vm141, %v30, 0
  %v149 = vsel %vm141, %v31, 0
  %v152 = vsel %vm141, %v32, 0
  %v155 = vsel %vm141, %v33, 0
  %v158 = vsel %vm141, %v34, 0
  %v161 = vsel %vm141, %v35, 0
  %v164 = vsel %vm141, %v36, 0
  %v167 = vsel %vm141, %v37, 0
  %v170 = vsel %vm141, %v38, 0
  %v173 = vsel %vm141, %v39, 0
  %v176 = vsel %vm141, %v40, 0
  %v179 = vsel %vm141, %v41, 0
  %v182 = vsel %vm141, %v42, 0
  %v185 = vsel %vm141, %v43, 0
  %v188 = vsel %vm141, %v44, 0
  %190 = vmatprep.subr.mxu0 0.0
  %191 = vmatpush1.msra.mxu0 %v27
  %192 = vmatprep.subr.mxu0 0.0
  %193 = vmatpush1.msra.mxu0 %v28
  %194 = vmatprep.subr.mxu0 0.0
  %195 = vmatpush1.msra.mxu0 0.0
  %196 = vmatprep.subr.mxu0 0.0
  %197 = vmatpush1.msra.mxu0 0.0
  %198 = vmatprep.subr.mxu0 0.0
  %199 = vmatpush1.msra.mxu0 0.0
  %200 = vmatprep.subr.mxu0 0.0
  %201 = vmatpush1.msra.mxu0 0.0
  %202 = vmatprep.subr.mxu0 0.0
  %203 = vmatpush1.msra.mxu0 0.0
  %204 = vmatprep.subr.mxu0 0.0
  %205 = vmatpush1.msra.mxu0 0.0
  %206 = vmatprep.subr.mxu0 0.0
  %207 = vmatpush1.msra.mxu0 0.0
  %208 = vmatprep.subr.mxu0 0.0
  %209 = vmatpush1.msra.mxu0 0.0
  %210 = vmatprep.subr.mxu0 0.0
  %211 = vmatpush1.msra.mxu0 0.0
  %212 = vmatprep.subr.mxu0 0.0
  %213 = vmatpush1.msra.mxu0 0.0
  %214 = vmatprep.subr.mxu0 0.0
  %215 = vmatpush1.msra.mxu0 0.0
  %216 = vmatprep.subr.mxu0 0.0
  %217 = vmatpush1.msra.mxu0 0.0
  %218 = vmatprep.subr.mxu0 0.0
  %219 = vmatpush1.msra.mxu0 0.0
  %220 = vmatprep.subr.mxu0 0.0
  %221 = vmatpush1.msra.mxu0 0.0
  %222 = vmatprep.subr.mxu0 0.0
  %223 = vmatpush1.msra.mxu0 0.0
  %224 = vmatprep.subr.mxu0 0.0
  %225 = vmatpush1.msra.mxu0 0.0
  %226 = vmatprep.subr.mxu0 0.0
  %227 = vmatpush1.msra.mxu0 0.0
  %228 = vmatprep.subr.mxu0 0.0
  %229 = vmatpush1.msra.mxu0 0.0
  %230 = vmatprep.subr.mxu0 0.0
  %231 = vmatpush1.msra.mxu0 0.0
  %232 = vmatprep.subr.mxu0 0.0
  %233 = vmatpush1.msra.mxu0 0.0
  %234 = vmatprep.subr.mxu0 0.0
  %235 = vmatpush1.msra.mxu0 0.0
  %236 = vmatprep.subr.mxu0 0.0
  %237 = vmatpush1.msra.mxu0 0.0
  %238 = vmatprep.subr.mxu0 0.0
  %239 = vmatpush1.msra.mxu0 0.0
  %240 = vmatprep.subr.mxu0 0.0
  %241 = vmatpush1.msra.mxu0 0.0
  %242 = vmatprep.subr.mxu0 0.0
  %243 = vmatpush1.msra.mxu0 0.0
  %244 = vmatprep.subr.mxu0 0.0
  %245 = vmatpush1.msra.mxu0 0.0
  %246 = vmatprep.subr.mxu0 0.0
  %247 = vmatpush1.msra.mxu0 0.0
  %248 = vmatprep.subr.mxu0 0.0
  %249 = vmatpush1.msra.mxu0 0.0
  %250 = vmatprep.subr.mxu0 0.0
  %251 = vmatpush1.msra.mxu0 0.0
  %252 = vmatprep.subr.mxu0 0.0
  %253 = vmatpush1.msra.mxu0 0.0
  %254 = vmatprep.mubr.f32.mxu0 0.0
  %255 = vmatmul.mubr.f32.gmra.mrb[0].mxu0 %v143
  %v256 = vpop.f32.mrb[0].mxu0
  %v257 = vadd.f32 %v64, %v256
  %v258 = vpop.f32.mrb[0].mxu0
  %259 = vmatprep.mubr.f32.mxu0 0.0
  %260 = vmatmul.mubr.f32.gmra.mrb[0].mxu0 %v146
  %v261 = vpop.f32.mrb[0].mxu0
  %v262 = vadd.f32 %v69, %v261
  %v263 = vpop.f32.mrb[0].mxu0
  %264 = vmatprep.mubr.f32.mxu0 0.0
  %265 = vmatmul.mubr.f32.gmra.mrb[0].mxu0 %v149
  %v266 = vpop.f32.mrb[0].mxu0
  %v267 = vadd.f32 %v74, %v266
  %v268 = vpop.f32.mrb[0].mxu0
  %269 = vmatprep.mubr.f32.mxu0 0.0
  %270 = vmatmul.mubr.f32.gmra.mrb[0].mxu0 %v152
  %v271 = vpop.f32.mrb[0].mxu0
  %v272 = vadd.f32 %v79, %v271
  %v273 = vpop.f32.mrb[0].mxu0
  %274 = vmatprep.mubr.f32.mxu0 0.0
  %275 = vmatmul.mubr.f32.gmra.mrb[0].mxu0 %v155
  %v276 = vpop.f32.mrb[0].mxu0
  %v277 = vadd.f32 %v84, %v276
  %v278 = vpop.f32.mrb[0].mxu0
  %279 = vmatprep.mubr.f32.mxu0 0.0
  %280 = vmatmul.mubr.f32.gmra.mrb[0].mxu0 %v158
  %v281 = vpop.f32.mrb[0].mxu0
  %v282 = vadd.f32 %v89, %v281
  %v283 = vpop.f32.mrb[0].mxu0
  %284 = vmatprep.mubr.f32.mxu0 0.0
  %285 = vmatmul.mubr.f32.gmra.mrb[0].mxu0 %v161
  %v286 = vpop.f32.mrb[0].mxu0
  %v287 = vadd.f32 %v94, %v286
  %v288 = vpop.f32.mrb[0].mxu0
  %289 = vmatprep.mubr.f32.mxu0 0.0
  %290 = vmatmul.mubr.f32.gmra.mrb[0].mxu0 %v164
  %v291 = vpop.f32.mrb[0].mxu0
  %v292 = vadd.f32 %v99, %v291
  %v293 = vpop.f32.mrb[0].mxu0
  %294 = vmatprep.mubr.f32.mxu0 0.0
  %295 = vmatmul.mubr.f32.gmra.mrb[0].mxu0 %v167
  %v296 = vpop.f32.mrb[0].mxu0
  %v297 = vadd.f32 %v104, %v296
  %v298 = vpop.f32.mrb[0].mxu0
  %299 = vmatprep.mubr.f32.mxu0 0.0
  %300 = vmatmul.mubr.f32.gmra.mrb[0].mxu0 %v170
  %v301 = vpop.f32.mrb[0].mxu0
  %v302 = vadd.f32 %v109, %v301
  %v303 = vpop.f32.mrb[0].mxu0
  %304 = vmatprep.mubr.f32.mxu0 0.0
  %305 = vmatmul.mubr.f32.gmra.mrb[0].mxu0 %v173
  %v306 = vpop.f32.mrb[0].mxu0
  %v307 = vadd.f32 %v114, %v306
  %v308 = vpop.f32.mrb[0].mxu0
  %309 = vmatprep.mubr.f32.mxu0 0.0
  %310 = vmatmul.mubr.f32.gmra.mrb[0].mxu0 %v176
  %v311 = vpop.f32.mrb[0].mxu0
  %v312 = vadd.f32 %v119, %v311
  %v313 = vpop.f32.mrb[0].mxu0
  %314 = vmatprep.mubr.f32.mxu0 0.0
  %315 = vmatmul.mubr.f32.gmra.mrb[0].mxu0 %v179
  %v316 = vpop.f32.mrb[0].mxu0
  %v317 = vadd.f32 %v124, %v316
  %v318 = vpop.f32.mrb[0].mxu0
  %319 = vmatprep.mubr.f32.mxu0 0.0
  %320 = vmatmul.mubr.f32.gmra.mrb[0].mxu0 %v182
  %v321 = vpop.f32.mrb[0].mxu0
  %v322 = vadd.f32 %v129, %v321
  %v323 = vpop.f32.mrb[0].mxu0
  %324 = vmatprep.mubr.f32.mxu0 0.0
  %325 = vmatmul.mubr.f32.gmra.mrb[0].mxu0 %v185
  %v326 = vpop.f32.mrb[0].mxu0
  %v327 = vadd.f32 %v134, %v326
  %v328 = vpop.f32.mrb[0].mxu0
  %329 = vmatprep.mubr.f32.mxu0 0.0
  %330 = vmatmul.mubr.f32.gmra.mrb[0].mxu0 %v188
  %v331 = vpop.f32.mrb[0].mxu0
  %v332 = vadd.f32 %v139, %v331
  %v333 = vpop.f32.mrb[0].mxu0
  %334 = vdwg.mxu0
  %v335 = vpack.c.bf16 %v262, %v257
  %v336 = vpack.c.bf16 %v272, %v267
  %v337 = vpack.c.bf16 %v282, %v277
  %v338 = vpack.c.bf16 %v292, %v287
  %v339 = vpack.c.bf16 %v302, %v297
  %v340 = vpack.c.bf16 %v312, %v307
  %v341 = vpack.c.bf16 %v322, %v317
  %v342 = vpack.c.bf16 %v332, %v327
  %v343 = vtanh.bf16.pop %v335
  %v344 = vtanh.bf16.pop %v336
  %v345 = vtanh.bf16.pop %v337
  %v346 = vtanh.bf16.pop %v338
  %v347 = vtanh.bf16.pop %v339
  %v348 = vtanh.bf16.pop %v340
  %v349 = vtanh.bf16.pop %v341
  %v350 = vtanh.bf16.pop %v342
  %v351 = vld [vmem:[%s3] sm:$0xf]
  %v352 = vld [vmem:[%s3 + $0x4] sm:$0xf]
  %v353 = vld [vmem:[%s3 + $0x8] sm:$0xf]
  %v354 = vld [vmem:[%s3 + $0xc] sm:$0xf]
  %v355 = vld [vmem:[%s3 + $0x10] sm:$0xf]
  %v356 = vld [vmem:[%s3 + $0x14] sm:$0xf]
  %v357 = vld [vmem:[%s3 + $0x18] sm:$0xf]
  %v358 = vld [vmem:[%s3 + $0x1c] sm:$0xf]
  %v359 = vld [vmem:[%s3 + $0x20] sm:$0xf]
  %v360 = vld [vmem:[%s3 + $0x24] sm:$0xf]
  %v361 = vld [vmem:[%s3 + $0x28] sm:$0xf]
  %v362 = vld [vmem:[%s3 + $0x2c] sm:$0xf]
  %v363 = vld [vmem:[%s3 + $0x30] sm:$0xf]
  %v364 = vld [vmem:[%s3 + $0x34] sm:$0xf]
  %v365 = vld [vmem:[%s3 + $0x38] sm:$0xf]
  %v366 = vld [vmem:[%s3 + $0x3c] sm:$0xf]
  %v367 = vld [vmem:[%s3 + $0x40] sm:$0xf]
  %v368 = vld [vmem:[%s3 + $0x44] sm:$0xf]
  %v369 = vld [vmem:[%s3 + $0x48] sm:$0xf]
  %v370 = vld [vmem:[%s3 + $0x4c] sm:$0xf]
  %v371 = vld [vmem:[%s3 + $0x50] sm:$0xf]
  %v372 = vld [vmem:[%s3 + $0x54] sm:$0xf]
  %v373 = vld [vmem:[%s3 + $0x58] sm:$0xf]
  %v374 = vld [vmem:[%s3 + $0x5c] sm:$0xf]
  %v375 = vld [vmem:[%s3 + $0x60] sm:$0xf]
  %v376 = vld [vmem:[%s3 + $0x64] sm:$0xf]
  %v377 = vld [vmem:[%s3 + $0x68] sm:$0xf]
  %v378 = vld [vmem:[%s3 + $0x6c] sm:$0xf]
  %v379 = vld [vmem:[%s3 + $0x70] sm:$0xf]
  %v380 = vld [vmem:[%s3 + $0x74] sm:$0xf]
  %v381 = vld [vmem:[%s3 + $0x78] sm:$0xf]
  %v382 = vld [vmem:[%s3 + $0x7c] sm:$0xf]
  %v383 = vld [vmem:[%s4] sm:$0xff]
  %v384 = vld [vmem:[%s4 + $0x8] sm:$0xff]
  %v385 = vld [vmem:[%s4 + $0x10] sm:$0xff]
  %v386 = vld [vmem:[%s4 + $0x18] sm:$0xff]
  %v387 = vld [vmem:[%s4 + $0x20] sm:$0xff]
  %v388 = vld [vmem:[%s4 + $0x28] sm:$0xff]
  %v389 = vld [vmem:[%s4 + $0x30] sm:$0xff]
  %v390 = vld [vmem:[%s4 + $0x38] sm:$0xff]
  %v391 = vld [vmem:[%s4 + $0x40] sm:$0xff]
  %v392 = vld [vmem:[%s4 + $0x48] sm:$0xff]
  %v393 = vld [vmem:[%s4 + $0x50] sm:$0xff]
  %v394 = vld [vmem:[%s4 + $0x58] sm:$0xff]
  %v395 = vld [vmem:[%s4 + $0x60] sm:$0xff]
  %v396 = vld [vmem:[%s4 + $0x68] sm:$0xff]
  %v397 = vld [vmem:[%s4 + $0x70] sm:$0xff]
  %v398 = vld [vmem:[%s4 + $0x78] sm:$0xff]
  %v399 = vld [vmem:[%s4 + $0x80] sm:$0xff]
  %v400 = vld [vmem:[%s4 + $0x88] sm:$0xff]
  %v401 = vld [vmem:[%s4 + $0x90] sm:$0xff]
  %v402 = vld [vmem:[%s4 + $0x98] sm:$0xff]
  %v403 = vld [vmem:[%s4 + $0xa0] sm:$0xff]
  %v404 = vld [vmem:[%s4 + $0xa8] sm:$0xff]
  %v405 = vld [vmem:[%s4 + $0xb0] sm:$0xff]
  %v406 = vld [vmem:[%s4 + $0xb8] sm:$0xff]
  %v407 = vld [vmem:[%s4 + $0xc0] sm:$0xff]
  %v408 = vld [vmem:[%s4 + $0xc8] sm:$0xff]
  %v409 = vld [vmem:[%s4 + $0xd0] sm:$0xff]
  %v410 = vld [vmem:[%s4 + $0xd8] sm:$0xff]
  %v411 = vld [vmem:[%s4 + $0xe0] sm:$0xff]
  %v412 = vld [vmem:[%s4 + $0xe8] sm:$0xff]
  %v413 = vld [vmem:[%s4 + $0xf0] sm:$0xff]
  %v414 = vld [vmem:[%s4 + $0xf8] sm:$0xff]
  %416 = vset.pattern.permute.xlu0 0
  %417 = vperm.xlu0 %416, %v383
  %v418 = vpop.permute.xlu0 %417
  %421 = vset.pattern.permute.xlu0 0
  %422 = vperm.xlu0 %421, %v384
  %v423 = vpop.permute.xlu0 %422
  %426 = vset.pattern.permute.xlu0 0
  %427 = vperm.xlu0 %426, %v385
  %v428 = vpop.permute.xlu0 %427
  %431 = vset.pattern.permute.xlu0 0
  %432 = vperm.xlu0 %431, %v386
  %v433 = vpop.permute.xlu0 %432
  %436 = vset.pattern.permute.xlu0 0
  %437 = vperm.xlu0 %436, %v387
  %v438 = vpop.permute.xlu0 %437
  %441 = vset.pattern.permute.xlu0 0
  %442 = vperm.xlu0 %441, %v388
  %v443 = vpop.permute.xlu0 %442
  %446 = vset.pattern.permute.xlu0 0
  %447 = vperm.xlu0 %446, %v389
  %v448 = vpop.permute.xlu0 %447
  %451 = vset.pattern.permute.xlu0 0
  %452 = vperm.xlu0 %451, %v390
  %v453 = vpop.permute.xlu0 %452
  %456 = vset.pattern.permute.xlu0 0
  %457 = vperm.xlu0 %456, %v391
  %v458 = vpop.permute.xlu0 %457
  %461 = vset.pattern.permute.xlu0 0
  %462 = vperm.xlu0 %461, %v392
  %v463 = vpop.permute.xlu0 %462
  %466 = vset.pattern.permute.xlu0 0
  %467 = vperm.xlu0 %466, %v393
  %v468 = vpop.permute.xlu0 %467
  %471 = vset.pattern.permute.xlu0 0
  %472 = vperm.xlu0 %471, %v394
  %v473 = vpop.permute.xlu0 %472
  %476 = vset.pattern.permute.xlu0 0
  %477 = vperm.xlu0 %476, %v395
  %v478 = vpop.permute.xlu0 %477
  %481 = vset.pattern.permute.xlu0 0
  %482 = vperm.xlu0 %481, %v396
  %v483 = vpop.permute.xlu0 %482
  %486 = vset.pattern.permute.xlu0 0
  %487 = vperm.xlu0 %486, %v397
  %v488 = vpop.permute.xlu0 %487
  %491 = vset.pattern.permute.xlu0 0
  %492 = vperm.xlu0 %491, %v398
  %v493 = vpop.permute.xlu0 %492
  %496 = vset.pattern.permute.xlu0 0
  %497 = vperm.xlu0 %496, %v399
  %v498 = vpop.permute.xlu0 %497
  %501 = vset.pattern.permute.xlu0 0
  %502 = vperm.xlu0 %501, %v400
  %v503 = vpop.permute.xlu0 %502
  %506 = vset.pattern.permute.xlu0 0
  %507 = vperm.xlu0 %506, %v401
  %v508 = vpop.permute.xlu0 %507
  %511 = vset.pattern.permute.xlu0 0
  %512 = vperm.xlu0 %511, %v402
  %v513 = vpop.permute.xlu0 %512
  %516 = vset.pattern.permute.xlu0 0
  %517 = vperm.xlu0 %516, %v403
  %v518 = vpop.permute.xlu0 %517
  %521 = vset.pattern.permute.xlu0 0
  %522 = vperm.xlu0 %521, %v404
  %v523 = vpop.permute.xlu0 %522
  %526 = vset.pattern.permute.xlu0 0
  %527 = vperm.xlu0 %526, %v405
  %v528 = vpop.permute.xlu0 %527
  %531 = vset.pattern.permute.xlu0 0
  %532 = vperm.xlu0 %531, %v406
  %v533 = vpop.permute.xlu0 %532
  %536 = vset.pattern.permute.xlu0 0
  %537 = vperm.xlu0 %536, %v407
  %v538 = vpop.permute.xlu0 %537
  %541 = vset.pattern.permute.xlu0 0
  %542 = vperm.xlu0 %541, %v408
  %v543 = vpop.permute.xlu0 %542
  %546 = vset.pattern.permute.xlu0 0
  %547 = vperm.xlu0 %546, %v409
  %v548 = vpop.permute.xlu0 %547
  %551 = vset.pattern.permute.xlu0 0
  %552 = vperm.xlu0 %551, %v410
  %v553 = vpop.permute.xlu0 %552
  %556 = vset.pattern.permute.xlu0 0
  %557 = vperm.xlu0 %556, %v411
  %v558 = vpop.permute.xlu0 %557
  %561 = vset.pattern.permute.xlu0 0
  %562 = vperm.xlu0 %561, %v412
  %v563 = vpop.permute.xlu0 %562
  %566 = vset.pattern.permute.xlu0 0
  %567 = vperm.xlu0 %566, %v413
  %v568 = vpop.permute.xlu0 %567
  %571 = vset.pattern.permute.xlu0 0
  %572 = vperm.xlu0 %571, %v414
  %v573 = vpop.permute.xlu0 %572
  %v607 = vunpack.c.l.b16 %v351
  %v608 = vunpack.c.l.b16 %v352
  %v609 = vunpack.c.l.b16 %v353
  %v610 = vunpack.c.l.b16 %v354
  %v611 = vunpack.c.l.b16 %v355
  %v612 = vunpack.c.l.b16 %v356
  %v613 = vunpack.c.l.b16 %v357
  %v614 = vunpack.c.l.b16 %v358
  %v615 = vunpack.c.l.b16 %v359
  %v616 = vunpack.c.l.b16 %v360
  %v617 = vunpack.c.l.b16 %v361
  %v618 = vunpack.c.l.b16 %v362
  %v619 = vunpack.c.l.b16 %v363
  %v620 = vunpack.c.l.b16 %v364
  %v621 = vunpack.c.l.b16 %v365
  %v622 = vunpack.c.l.b16 %v366
  %v623 = vunpack.c.l.b16 %v367
  %v624 = vunpack.c.l.b16 %v368
  %v625 = vunpack.c.l.b16 %v369
  %v626 = vunpack.c.l.b16 %v370
  %v627 = vunpack.c.l.b16 %v371
  %v628 = vunpack.c.l.b16 %v372
  %v629 = vunpack.c.l.b16 %v373
  %v630 = vunpack.c.l.b16 %v374
  %v631 = vunpack.c.l.b16 %v375
  %v632 = vunpack.c.l.b16 %v376
  %v633 = vunpack.c.l.b16 %v377
  %v634 = vunpack.c.l.b16 %v378
  %v635 = vunpack.c.l.b16 %v379
  %v636 = vunpack.c.l.b16 %v380
  %v637 = vunpack.c.l.b16 %v381
  %v638 = vunpack.c.l.b16 %v382
  %v639 = vpack.c.b16 %v608, %v607
  %v640 = vpack.c.b16 %v610, %v609
  %v641 = vpack.c.b16 %v612, %v611
  %v642 = vpack.c.b16 %v614, %v613
  %v643 = vpack.c.b16 %v616, %v615
  %v644 = vpack.c.b16 %v618, %v617
  %v645 = vpack.c.b16 %v620, %v619
  %v646 = vpack.c.b16 %v622, %v621
  %v647 = vpack.c.b16 %v624, %v623
  %v648 = vpack.c.b16 %v626, %v625
  %v649 = vpack.c.b16 %v628, %v627
  %v650 = vpack.c.b16 %v630, %v629
  %v651 = vpack.c.b16 %v632, %v631
  %v652 = vpack.c.b16 %v634, %v633
  %v653 = vpack.c.b16 %v636, %v635
  %v654 = vpack.c.b16 %v638, %v637
  %671 = vmatprep.subr.bf16.mxu0 0
  %672 = vmatpush1.bf16.msra.mxu0 %v343
  %673 = vmatprep.subr.bf16.mxu0 0
  %674 = vmatpush1.bf16.msra.mxu0 %v344
  %675 = vmatprep.subr.bf16.mxu0 0
  %676 = vmatpush1.bf16.msra.mxu0 %v345
  %677 = vmatprep.subr.bf16.mxu0 0
  %678 = vmatpush1.bf16.msra.mxu0 %v346
  %679 = vmatprep.subr.bf16.mxu0 0
  %680 = vmatpush1.bf16.msra.mxu0 %v347
  %681 = vmatprep.subr.bf16.mxu0 0
  %682 = vmatpush1.bf16.msra.mxu0 %v348
  %683 = vmatprep.subr.bf16.mxu0 0
  %684 = vmatpush1.bf16.msra.mxu0 %v349
  %685 = vmatprep.subr.bf16.mxu0 0
  %686 = vmatpush1.bf16.msra.mxu0 %v350
  %687 = vmatprep.subr.bf16.mxu0 0
  %688 = vmatpush1.bf16.msra.mxu0 0
  %689 = vmatprep.subr.bf16.mxu0 0
  %690 = vmatpush1.bf16.msra.mxu0 0
  %691 = vmatprep.subr.bf16.mxu0 0
  %692 = vmatpush1.bf16.msra.mxu0 0
  %693 = vmatprep.subr.bf16.mxu0 0
  %694 = vmatpush1.bf16.msra.mxu0 0
  %695 = vmatprep.subr.bf16.mxu0 0
  %696 = vmatpush1.bf16.msra.mxu0 0
  %697 = vmatprep.subr.bf16.mxu0 0
  %698 = vmatpush1.bf16.msra.mxu0 0
  %699 = vmatprep.subr.bf16.mxu0 0
  %700 = vmatpush1.bf16.msra.mxu0 0
  %701 = vmatprep.subr.bf16.mxu0 0
  %702 = vmatpush1.bf16.msra.mxu0 0
  %703 = vmatprep.mubr.bf16.mxu0 0
  %704 = vmatmul.mubr.bf16.gmra.mrb[0].mxu0 %v639
  %v705 = vpop.f32.mrb[0].mxu0
  %v706 = vadd.f32 %v418, %v705
  %v707 = vpop.f32.mrb[0].mxu0
  %v708 = vpop.f32.mrb[0].mxu0
  %v709 = vadd.f32 %v423, %v708
  %v710 = vpop.f32.mrb[0].mxu0
  %711 = vmatprep.mubr.bf16.mxu0 0
  %712 = vmatmul.mubr.bf16.gmra.mrb[0].mxu0 %v640
  %v713 = vpop.f32.mrb[0].mxu0
  %v714 = vadd.f32 %v428, %v713
  %v715 = vpop.f32.mrb[0].mxu0
  %v716 = vpop.f32.mrb[0].mxu0
  %v717 = vadd.f32 %v433, %v716
  %v718 = vpop.f32.mrb[0].mxu0
  %719 = vmatprep.mubr.bf16.mxu0 0
  %720 = vmatmul.mubr.bf16.gmra.mrb[0].mxu0 %v641
  %v721 = vpop.f32.mrb[0].mxu0
  %v722 = vadd.f32 %v438, %v721
  %v723 = vpop.f32.mrb[0].mxu0
  %v724 = vpop.f32.mrb[0].mxu0
  %v725 = vadd.f32 %v443, %v724
  %v726 = vpop.f32.mrb[0].mxu0
  %727 = vmatprep.mubr.bf16.mxu0 0
  %728 = vmatmul.mubr.bf16.gmra.mrb[0].mxu0 %v642
  %v729 = vpop.f32.mrb[0].mxu0
  %v730 = vadd.f32 %v448, %v729
  %v731 = vpop.f32.mrb[0].mxu0
  %v732 = vpop.f32.mrb[0].mxu0
  %v733 = vadd.f32 %v453, %v732
  %v734 = vpop.f32.mrb[0].mxu0
  %735 = vmatprep.mubr.bf16.mxu0 0
  %736 = vmatmul.mubr.bf16.gmra.mrb[0].mxu0 %v643
  %v737 = vpop.f32.mrb[0].mxu0
  %v738 = vadd.f32 %v458, %v737
  %v739 = vpop.f32.mrb[0].mxu0
  %v740 = vpop.f32.mrb[0].mxu0
  %v741 = vadd.f32 %v463, %v740
  %v742 = vpop.f32.mrb[0].mxu0
  %743 = vmatprep.mubr.bf16.mxu0 0
  %744 = vmatmul.mubr.bf16.gmra.mrb[0].mxu0 %v644
  %v745 = vpop.f32.mrb[0].mxu0
  %v746 = vadd.f32 %v468, %v745
  %v747 = vpop.f32.mrb[0].mxu0
  %v748 = vpop.f32.mrb[0].mxu0
  %v749 = vadd.f32 %v473, %v748
  %v750 = vpop.f32.mrb[0].mxu0
  %751 = vmatprep.mubr.bf16.mxu0 0
  %752 = vmatmul.mubr.bf16.gmra.mrb[0].mxu0 %v645
  %v753 = vpop.f32.mrb[0].mxu0
  %v754 = vadd.f32 %v478, %v753
  %v755 = vpop.f32.mrb[0].mxu0
  %v756 = vpop.f32.mrb[0].mxu0
  %v757 = vadd.f32 %v483, %v756
  %v758 = vpop.f32.mrb[0].mxu0
  %759 = vmatprep.mubr.bf16.mxu0 0
  %760 = vmatmul.mubr.bf16.gmra.mrb[0].mxu0 %v646
  %v761 = vpop.f32.mrb[0].mxu0
  %v762 = vadd.f32 %v488, %v761
  %v763 = vpop.f32.mrb[0].mxu0
  %v764 = vpop.f32.mrb[0].mxu0
  %v765 = vadd.f32 %v493, %v764
  %v766 = vpop.f32.mrb[0].mxu0
  %767 = vmatprep.mubr.bf16.mxu0 0
  %768 = vmatmul.mubr.bf16.gmra.mrb[0].mxu0 %v647
  %v769 = vpop.f32.mrb[0].mxu0
  %v770 = vadd.f32 %v498, %v769
  %v771 = vpop.f32.mrb[0].mxu0
  %v772 = vpop.f32.mrb[0].mxu0
  %v773 = vadd.f32 %v503, %v772
  %v774 = vpop.f32.mrb[0].mxu0
  %775 = vmatprep.mubr.bf16.mxu0 0
  %776 = vmatmul.mubr.bf16.gmra.mrb[0].mxu0 %v648
  %v777 = vpop.f32.mrb[0].mxu0
  %v778 = vadd.f32 %v508, %v777
  %v779 = vpop.f32.mrb[0].mxu0
  %v780 = vpop.f32.mrb[0].mxu0
  %v781 = vadd.f32 %v513, %v780
  %v782 = vpop.f32.mrb[0].mxu0
  %783 = vmatprep.mubr.bf16.mxu0 0
  %784 = vmatmul.mubr.bf16.gmra.mrb[0].mxu0 %v649
  %v785 = vpop.f32.mrb[0].mxu0
  %v786 = vadd.f32 %v518, %v785
  %v787 = vpop.f32.mrb[0].mxu0
  %v788 = vpop.f32.mrb[0].mxu0
  %v789 = vadd.f32 %v523, %v788
  %v790 = vpop.f32.mrb[0].mxu0
  %791 = vmatprep.mubr.bf16.mxu0 0
  %792 = vmatmul.mubr.bf16.gmra.mrb[0].mxu0 %v650
  %v793 = vpop.f32.mrb[0].mxu0
  %v794 = vadd.f32 %v528, %v793
  %v795 = vpop.f32.mrb[0].mxu0
  %v796 = vpop.f32.mrb[0].mxu0
  %v797 = vadd.f32 %v533, %v796
  %v798 = vpop.f32.mrb[0].mxu0
  %799 = vmatprep.mubr.bf16.mxu0 0
  %800 = vmatmul.mubr.bf16.gmra.mrb[0].mxu0 %v651
  %v801 = vpop.f32.mrb[0].mxu0
  %v802 = vadd.f32 %v538, %v801
  %v803 = vpop.f32.mrb[0].mxu0
  %v804 = vpop.f32.mrb[0].mxu0
  %v805 = vadd.f32 %v543, %v804
  %v806 = vpop.f32.mrb[0].mxu0
  %807 = vmatprep.mubr.bf16.mxu0 0
  %808 = vmatmul.mubr.bf16.gmra.mrb[0].mxu0 %v652
  %v809 = vpop.f32.mrb[0].mxu0
  %v810 = vadd.f32 %v548, %v809
  %v811 = vpop.f32.mrb[0].mxu0
  %v812 = vpop.f32.mrb[0].mxu0
  %v813 = vadd.f32 %v553, %v812
  %v814 = vpop.f32.mrb[0].mxu0
  %815 = vmatprep.mubr.bf16.mxu0 0
  %816 = vmatmul.mubr.bf16.gmra.mrb[0].mxu0 %v653
  %v817 = vpop.f32.mrb[0].mxu0
  %v818 = vadd.f32 %v558, %v817
  %v819 = vpop.f32.mrb[0].mxu0
  %v820 = vpop.f32.mrb[0].mxu0
  %v821 = vadd.f32 %v563, %v820
  %v822 = vpop.f32.mrb[0].mxu0
  %823 = vmatprep.mubr.bf16.mxu0 0
  %824 = vmatmul.mubr.bf16.gmra.mrb[0].mxu0 %v654
  %v825 = vpop.f32.mrb[0].mxu0
  %v826 = vadd.f32 %v568, %v825
  %v827 = vpop.f32.mrb[0].mxu0
  %v828 = vpop.f32.mrb[0].mxu0
  %v829 = vadd.f32 %v573, %v828
  %v830 = vpop.f32.mrb[0].mxu0
  %831 = vdwg.mxu0
  %v832 = vpack.c.bf16 %v709, %v706
  %v833 = vpack.c.bf16 %v717, %v714
  %v834 = vpack.c.bf16 %v725, %v722
  %v835 = vpack.c.bf16 %v733, %v730
  %v836 = vpack.c.bf16 %v741, %v738
  %v837 = vpack.c.bf16 %v749, %v746
  %v838 = vpack.c.bf16 %v757, %v754
  %v839 = vpack.c.bf16 %v765, %v762
  %v840 = vpack.c.bf16 %v773, %v770
  %v841 = vpack.c.bf16 %v781, %v778
  %v842 = vpack.c.bf16 %v789, %v786
  %v843 = vpack.c.bf16 %v797, %v794
  %v844 = vpack.c.bf16 %v805, %v802
  %v845 = vpack.c.bf16 %v813, %v810
  %v846 = vpack.c.bf16 %v821, %v818
  %v847 = vpack.c.bf16 %v829, %v826
  %v848 = vtanh.bf16.pop %v832
  %v849 = vtanh.bf16.pop %v833
  %v850 = vtanh.bf16.pop %v834
  %v851 = vtanh.bf16.pop %v835
  %v852 = vtanh.bf16.pop %v836
  %v853 = vtanh.bf16.pop %v837
  %v854 = vtanh.bf16.pop %v838
  %v855 = vtanh.bf16.pop %v839
  %v856 = vtanh.bf16.pop %v840
  %v857 = vtanh.bf16.pop %v841
  %v858 = vtanh.bf16.pop %v842
  %v859 = vtanh.bf16.pop %v843
  %v860 = vtanh.bf16.pop %v844
  %v861 = vtanh.bf16.pop %v845
  %v862 = vtanh.bf16.pop %v846
  %v863 = vtanh.bf16.pop %v847
  %v864 = vld [vmem:[%s5] sm:$0xff]
  %v865 = vld [vmem:[%s5 + $0x8] sm:$0xff]
  %v866 = vld [vmem:[%s6] sm:$0xff]
  %v867 = vld [vmem:[%s6 + $0x8] sm:$0xff]
  %869 = vset.pattern.permute.xlu0 0
  %870 = vperm.xlu0 %869, %v866
  %v871 = vpop.permute.xlu0 %870
  %874 = vset.pattern.permute.xlu0 0
  %875 = vperm.xlu0 %874, %v867
  %v876 = vpop.permute.xlu0 %875
  %v880 = vunpack.c.l.b16 %v864
  %v881 = vunpack.c.h.b16 %v864
  %v882 = vunpack.c.l.b16 %v865
  %v883 = vunpack.c.h.b16 %v865
  %v884 = vpack.c.b16 %v882, %v880
  %v885 = vpack.c.b16 %v883, %v881
  %888 = vmatprep.subr.bf16.mxu0 0
  %889 = vmatpush1.bf16.msra.mxu0 %v848
  %890 = vmatprep.subr.bf16.mxu0 0
  %891 = vmatpush1.bf16.msra.mxu0 %v849
  %892 = vmatprep.subr.bf16.mxu0 0
  %893 = vmatpush1.bf16.msra.mxu0 %v850
  %894 = vmatprep.subr.bf16.mxu0 0
  %895 = vmatpush1.bf16.msra.mxu0 %v851
  %896 = vmatprep.subr.bf16.mxu0 0
  %897 = vmatpush1.bf16.msra.mxu0 %v852
  %898 = vmatprep.subr.bf16.mxu0 0
  %899 = vmatpush1.bf16.msra.mxu0 %v853
  %900 = vmatprep.subr.bf16.mxu0 0
  %901 = vmatpush1.bf16.msra.mxu0 %v854
  %902 = vmatprep.subr.bf16.mxu0 0
  %903 = vmatpush1.bf16.msra.mxu0 %v855
  %904 = vmatprep.subr.bf16.mxu0 0
  %905 = vmatpush1.bf16.msra.mxu0 %v856
  %906 = vmatprep.subr.bf16.mxu0 0
  %907 = vmatpush1.bf16.msra.mxu0 %v857
  %908 = vmatprep.subr.bf16.mxu0 0
  %909 = vmatpush1.bf16.msra.mxu0 %v858
  %910 = vmatprep.subr.bf16.mxu0 0
  %911 = vmatpush1.bf16.msra.mxu0 %v859
  %912 = vmatprep.subr.bf16.mxu0 0
  %913 = vmatpush1.bf16.msra.mxu0 %v860
  %914 = vmatprep.subr.bf16.mxu0 0
  %915 = vmatpush1.bf16.msra.mxu0 %v861
  %916 = vmatprep.subr.bf16.mxu0 0
  %917 = vmatpush1.bf16.msra.mxu0 %v862
  %918 = vmatprep.subr.bf16.mxu0 0
  %919 = vmatpush1.bf16.msra.mxu0 %v863
  %920 = vmatprep.mubr.bf16.mxu0 %v885
  %921 = vmatmul.mubr.bf16.gmra.mrb[0].mxu0 %v884
  %v922 = vpop.f32.mrb[0].mxu0
  %v923 = vadd.f32 %v871, %v922
  %v924 = vpop.f32.mrb[0].mxu0
  %v925 = vpop.f32.mrb[0].mxu0
  %v926 = vadd.f32 %v876, %v925
  %v927 = vpop.f32.mrb[0].mxu0
  %928 = vdwg.mxu0
  %vm929 = vcmask 64512
  %v930 = vsel %vm929, %v923, -inf
  %v931 = vsel %vm929, %v926, -inf
  %v932 = vmax.f32 %v930, %v931
  %v933 = vrot.slane %v932, 4
  %v934 = vmax.f32 %v932, %v933
  %v935 = vrot.slane %v934, 2
  %v936 = vmax.f32 %v934, %v935
  %v937 = vrot.slane %v936, 1
  %v938 = vmax.f32 %v936, %v937
  %v939 = vsub.f32 %v923, %v938
  %v940 = vsub.f32 %v926, %v938
  %v941 = vmul.f32 %v939, 1.442695
  %v942 = vpow.pop %v941
  %v943 = vmul.f32 %v940, 1.442695
  %v944 = vpow.pop %v943
  %v945 = vsel %vm929, %v942, 0.0
  %v946 = vsel %vm929, %v944, 0.0
  %v947 = vadd.f32 %v945, %v946
  %v948 = vrot.slane %v947, 4
  %v949 = vadd.f32 %v947, %v948
  %v950 = vrot.slane %v949, 2
  %v951 = vadd.f32 %v949, %v950
  %v952 = vrot.slane %v951, 1
  %v953 = vadd.f32 %v951, %v952
  %v954 = vrcp.pop %v953
  %v955 = vmul.f32 %v942, %v954
  %v956 = vmul.f32 %v944, %v954
  %957 = vst.msk [vmem:[%s7] sm:$0xff] %vm929, %v955
  %958 = vst.msk [vmem:[%s7 + $0x8] sm:$0xff] %vm929, %v956
  // Predicated region
  $region30: #{tpu_custom_call.1} parent=0 // pred_check
    _
  $region31: #{tpu_custom_call.1} parent=0 // pred_check_branch
    %960 = sbr.rel (0) target = $region33
  $region32: #{tpu_custom_call.1} parent=0 // pred_region
    _
  $region33: #{tpu_custom_call.1} parent=0 // pred_fallthru
    _
  // Predicated region
  $region34: #{tpu_custom_call.1} parent=0 // pred_check
    _
  $region35: #{tpu_custom_call.1} parent=0 // pred_check_branch
    %962 = sbr.rel (0) target = $region37
  $region36: #{tpu_custom_call.1} parent=0 // pred_region
    _
  $region37: #{tpu_custom_call.1} parent=0 // pred_fallthru
    _

</llo_original>
